<compile_context>
chip_gen: v5e
topology: v5e:2x2
jax: 0.10.0
libtpu: 0.0.40
codegen_flags: <defaults>
</compile_context>

<pallas_src>
import functools

import jax
import jax.numpy as jnp
from jax import lax
from jax.experimental import pallas as pl
from jax.experimental.pallas import tpu as pltpu


# --------------------------------------------------------------------------- kernels


def _mm_bn_relu_kernel(a_ref, w_ref, scale_ref, shift_ref, o_ref, acc_ref, *,
                       tk, w_resident):
    """Multi-K-step kernel: acc over the K grid axis, BN affine + ReLU at finalize.

    a_ref:     (TM, TK)        bf16 im2col tile
    w_ref:     (K_pad, CN) or (TK, CN)  bf16 weight (resident or streamed)
    scale_ref: (1, CN)         f32 BN scale (gamma / sqrt(var+eps))
    shift_ref: (1, CN)         f32 BN shift (beta - mean*scale)
    o_ref:     (TM, CN)        bf16 output tile (lane-dense)
    acc_ref:   (TM, CN)        f32 accumulator scratch (lives across the K axis)
    """
    k = pl.program_id(1)

    @pl.when(k == 0)
    def _init():
        acc_ref[...] = jnp.zeros_like(acc_ref)

    if w_resident:
        start = pl.multiple_of(k * tk, tk)
        w = w_ref[pl.ds(start, tk), :]
    else:
        w = w_ref[...]
    acc_ref[...] += jnp.dot(a_ref[...], w, preferred_element_type=jnp.float32)

    @pl.when(k == pl.num_programs(1) - 1)
    def _finalize():
        y = acc_ref[...] * scale_ref[...] + shift_ref[...]
        o_ref[...] = jnp.maximum(y, 0.0).astype(o_ref.dtype)


def _mm_bn_relu_single_step_kernel(a_ref, w_ref, scale_ref, shift_ref, o_ref):
    """Single-K-step kernel: no accumulator scratch, no pl.when branches."""
    y = jnp.dot(a_ref[...], w_ref[...], preferred_element_type=jnp.float32)
    y = y * scale_ref[...] + shift_ref[...]
    o_ref[...] = jnp.maximum(y, 0.0).astype(o_ref.dtype)


# --------------------------------------------------------------------------- helpers


def _round_up(v, m):
    return (v + m - 1) // m * m


def _vmem_capacity_bytes():
    """Per-core VMEM capacity; conservative (v7x) fallback if the query fails."""
    try:
        cap = int(pltpu.get_tpu_info().vmem_capacity_bytes)
        if cap > 0:
            return cap
    except Exception:
        pass
    return 64 * 1024 * 1024


def _im2col_nhwc(x_nhwc, kh, kw, stride, pad):
    """Channels-last im2col (built in the dtype of x_nhwc, i.e. bf16 here).

    Returns (N*OH*OW, kh*kw*C), OH, OW.  K ordering is (i, j, c), matching an OIHW
    weight transposed to (KH, KW, C_in, C_out) and reshaped to (KH*KW*C_in, C_out).
    """
    N, H, W, C = x_nhwc.shape
    xp = jnp.pad(x_nhwc, ((0, 0), (pad, pad), (pad, pad), (0, 0)))
    OH = (H + 2 * pad - kh) // stride + 1
    OW = (W + 2 * pad - kw) // stride + 1
    cols = []
    for i in range(kh):
        for j in range(kw):
            cols.append(xp[:, i:i + stride * OH:stride, j:j + stride * OW:stride, :])
    patches = jnp.stack(cols, axis=3)                      # (N, OH, OW, kh*kw, C)
    return patches.reshape(N * OH * OW, kh * kw * C), OH, OW


# --------------------------------------------------------------------------- wrapper


@functools.partial(jax.jit, static_argnames=("stride", "pad"))
def basic_conv2d(x, weight, gamma, beta, running_mean, running_var,
                 *, stride=1, pad=1, eps=1e-5):
    """Fused Conv2d(bias=False) + BatchNorm2d(eval) + ReLU.

    x:      (N, C_in, H, W)         NCHW, float32 (PyTorch layout)
    weight: (C_out, C_in, KH, KW)   PyTorch OIHW conv weight
    """
    N, C_in, H, W = x.shape
    C_out, _, KH, KW = weight.shape

    # NCHW -> NHWC once, cast to bf16 up front so all glue (im2col, pads) is half-width.
    x_nhwc = jnp.transpose(x, (0, 2, 3, 1)).astype(jnp.bfloat16)

    if KH == 1 and KW == 1 and pad == 0 and stride == 1:
        # 1x1 conv: the im2col matrix is just x_nhwc flattened (free reshape).
        a = x_nhwc.reshape(N * H * W, C_in)
        OH, OW = H, W
    else:
        a, OH, OW = _im2col_nhwc(x_nhwc, KH, KW, stride, pad)
    M, K = a.shape

    # OIHW -> (KH, KW, C_in, C_out) -> (K, C_out), bf16. BN scale stays OUT of the
    # weight (applied in f32 inside the kernel's finalize step).
    w2d = jnp.transpose(weight, (2, 3, 1, 0)).reshape(K, C_out).astype(jnp.bfloat16)

    scale = (gamma / jnp.sqrt(running_var + eps)).astype(jnp.float32)   # (C_out,)
    shift = (beta - running_mean * scale).astype(jnp.float32)           # (C_out,)

    # ---- generation-aware tiling ------------------------------------------------
    vmem_cap = _vmem_capacity_bytes()
    vmem_limit = min(vmem_cap * 3 // 4, 96 * 1024 * 1024)   # ~96 MiB on v5e/v6e, ~48 MiB on v7x

    CN = _round_up(C_out, 128)                    # lane-dense output channels

    tm_max = 1024 if vmem_cap >= (100 << 20) else 512
    # Keep >=2 M tiles whenever M allows it (feeds both v7x TensorCores).
    TM = next((t for t in (1024, 512, 256, 128) if t <= tm_max and M >= 2 * t), None)
    if TM is None:
        TM = 128 if M > 128 else _round_up(max(M, 8), 8)
    M_pad = _round_up(M, TM)

    # Prefer a deep TK (512) and pad K up to it, instead of degrading TK to 128.
    K_pad128 = _round_up(K, 128)
    if K_pad128 <= 512:
        TK, K_pad = K_pad128, K_pad128
    else:
        TK, K_pad = 512, _round_up(K, 512)
    n_k = K_pad // TK

    a_p = jnp.pad(a, ((0, M_pad - M), (0, K_pad - K)))                  # bf16
    w_p = jnp.pad(w2d, ((0, K_pad - K), (0, CN - C_out)))               # bf16
    scale_p = jnp.pad(scale, (0, CN - C_out)).reshape(1, CN)
    shift_p = jnp.pad(shift, (0, CN - C_out)).reshape(1, CN)

    cost = pl.CostEstimate(
        flops=2 * M_pad * K_pad * CN,
        transcendentals=0,
        bytes_accessed=(a_p.size * 2 + w_p.size * 2
                        + (scale_p.size + shift_p.size) * 4 + M_pad * CN * 2),
    )

    out_dtype = jnp.bfloat16   # bf16 writeback halves the output HBM traffic

    if n_k == 1:
        # Single K step: whole weight resident, no accumulator scratch.
        out_flat = pl.pallas_call(
            _mm_bn_relu_single_step_kernel,
            out_shape=jax.ShapeDtypeStruct((M_pad, CN), out_dtype),
            grid_spec=pltpu.PrefetchScalarGridSpec(
                num_scalar_prefetch=0,
                grid=(M_pad // TM,),
                in_specs=[
                    pl.BlockSpec((TM, K_pad), lambda i: (i, 0)),    # A tile
                    pl.BlockSpec((K_pad, CN), lambda i: (0, 0)),    # resident weight
                    pl.BlockSpec((1, CN), lambda i: (0, 0)),        # BN scale
                    pl.BlockSpec((1, CN), lambda i: (0, 0)),        # BN shift
                ],
                out_specs=pl.BlockSpec((TM, CN), lambda i: (i, 0)),
            ),
            compiler_params=pltpu.CompilerParams(
                dimension_semantics=("parallel",),
                vmem_limit_bytes=vmem_limit,
            ),
            cost_estimate=cost,
        )(a_p, w_p, scale_p, shift_p)
    else:
        # Multi K step: hold the whole weight resident in VMEM if it fits (fetched
        # exactly once); otherwise stream (TK, CN) tiles per K step.
        w_resident = (K_pad * CN * 2) <= (16 * 1024 * 1024)
        if w_resident:
            w_spec = pl.BlockSpec((K_pad, CN), lambda i, k: (0, 0))
        else:
            w_spec = pl.BlockSpec((TK, CN), lambda i, k: (k, 0))
        kernel = functools.partial(_mm_bn_relu_kernel, tk=TK, w_resident=w_resident)

        out_flat = pl.pallas_call(
            kernel,
            out_shape=jax.ShapeDtypeStruct((M_pad, CN), out_dtype),
            grid_spec=pltpu.PrefetchScalarGridSpec(
                num_scalar_prefetch=0,
                grid=(M_pad // TM, n_k),        # K last ("arbitrary") — see invariant note
                in_specs=[
                    pl.BlockSpec((TM, TK), lambda i, k: (i, k)),    # A tile
                    w_spec,                                          # weight
                    pl.BlockSpec((1, CN), lambda i, k: (0, 0)),     # BN scale
                    pl.BlockSpec((1, CN), lambda i, k: (0, 0)),     # BN shift
                ],
                out_specs=pl.BlockSpec((TM, CN), lambda i, k: (i, 0)),
                scratch_shapes=[pltpu.VMEM((TM, CN), jnp.float32)],
            ),
            compiler_params=pltpu.CompilerParams(
                dimension_semantics=("parallel", "arbitrary"),
                vmem_limit_bytes=vmem_limit,
            ),
            cost_estimate=cost,
        )(a_p, w_p, scale_p, shift_p)

    out = out_flat[:M, :C_out].reshape(N, OH, OW, C_out)
    # Single NHWC -> NCHW transpose, done on bf16, then one cast back to the input dtype.
    return jnp.transpose(out, (0, 3, 1, 2)).astype(x.dtype)


# --------------------------------------------------------------------------- reference & demo


def _reference(x, weight, gamma, beta, running_mean, running_var, *, stride, pad, eps=1e-5):
    y = lax.conv_general_dilated(
        x, weight,
        window_strides=(stride, stride),
        padding=((pad, pad), (pad, pad)),
        dimension_numbers=("NCHW", "OIHW", "NCHW"),
    )
    scale = (gamma / jnp.sqrt(running_var + eps)).reshape(1, -1, 1, 1)
    shift = (beta - running_mean * gamma / jnp.sqrt(running_var + eps)).reshape(1, -1, 1, 1)
    return jnp.maximum(y * scale + shift, 0.0)


if __name__ == "__main__":
    key = jax.random.PRNGKey(0)
    k_x, k_w = jax.random.split(key)

    # Small InceptionV3-style BasicConv2d: kernel_size=3, stride=1, padding=1.
    N, C_in, H, W = 2, 4, 16, 16
    C_out, KH, KW = 8, 3, 3
    stride, pad = 1, 1

    x = jax.random.normal(k_x, (N, C_in, H, W), dtype=jnp.float32)
    weight = jax.random.normal(k_w, (C_out, C_in, KH, KW), dtype=jnp.float32) * 0.1

    # Freshly-initialized BatchNorm2d parameters (PyTorch defaults, eval mode).
    gamma = jnp.ones((C_out,), jnp.float32)
    beta = jnp.zeros((C_out,), jnp.float32)
    running_mean = jnp.zeros((C_out,), jnp.float32)
    running_var = jnp.ones((C_out,), jnp.float32)

    out = basic_conv2d(x, weight, gamma, beta, running_mean, running_var,
                       stride=stride, pad=pad)
    out = jax.block_until_ready(out)

    ref = _reference(x, weight, gamma, beta, running_mean, running_var,
                     stride=stride, pad=pad)
    assert out.shape == (N, C_out, H, W)
    # bf16 matmul operands / bf16 writeback (f32 accumulation & BN affine) -> loosened tolerance.
    assert jnp.allclose(out, ref, atol=5e-2, rtol=5e-2)

    print("KERNEL_OK")
</pallas_src>

<mosaic_0001>
module attributes {stable_mosaic.version = 11 : i64} {
  func.func @_mm_bn_relu_single_step_kernel(%arg0: i32, %arg1: memref<256x128xbf16, #tpu.memory_space<vmem>>, %arg2: memref<128x128xbf16, #tpu.memory_space<vmem>>, %arg3: memref<1x128xf32, #tpu.memory_space<vmem>>, %arg4: memref<1x128xf32, #tpu.memory_space<vmem>>, %arg5: memref<256x128xbf16, #tpu.memory_space<vmem>>) attributes {dimension_semantics = [#tpu.dimension_semantics<parallel>], iteration_bounds = array<i64: 2>, scalar_prefetch = 0 : i64, scratch_operands = 0 : i64, tpu.core_type = #tpu.core_type<tc>, window_params = [{transform_indices = @transform_0, window_bounds = array<i64: 256, 128>}, {pipeline_mode = #tpu.pipeline_mode<synchronous>, transform_indices = @transform_1, window_bounds = array<i64: 128, 128>}, {pipeline_mode = #tpu.pipeline_mode<synchronous>, transform_indices = @transform_2, window_bounds = array<i64: 1, 128>}, {pipeline_mode = #tpu.pipeline_mode<synchronous>, transform_indices = @transform_3, window_bounds = array<i64: 1, 128>}, {transform_indices = @transform_4, window_bounds = array<i64: 256, 128>}]} {
    %c0 = arith.constant 0 : index
    %c0_0 = arith.constant 0 : index
    %0 = vector.load %arg1[%c0, %c0_0] : memref<256x128xbf16, #tpu.memory_space<vmem>>, vector<256x128xbf16>
    %c0_1 = arith.constant 0 : index
    %c0_2 = arith.constant 0 : index
    %1 = vector.load %arg2[%c0_1, %c0_2] : memref<128x128xbf16, #tpu.memory_space<vmem>>, vector<128x128xbf16>
    %cst = arith.constant dense<0.000000e+00> : vector<256x128xf32>
    %2 = tpu.matmul %0, %1, %cst {dimension_numbers = #tpu.dot_dimension_numbers<[1], [0], [0], [1], [0, 0, 1, 1], [], []>} : vector<256x128xbf16>, vector<128x128xbf16>, vector<256x128xf32> -> vector<256x128xf32>
    %c0_3 = arith.constant 0 : index
    %c0_4 = arith.constant 0 : index
    %3 = vector.load %arg3[%c0_3, %c0_4] : memref<1x128xf32, #tpu.memory_space<vmem>>, vector<1x128xf32>
    %4 = vector.broadcast %3 : vector<1x128xf32> to vector<256x128xf32>
    %5 = arith.mulf %2, %4 : vector<256x128xf32>
    %c0_5 = arith.constant 0 : index
    %c0_6 = arith.constant 0 : index
    %6 = vector.load %arg4[%c0_5, %c0_6] : memref<1x128xf32, #tpu.memory_space<vmem>>, vector<1x128xf32>
    %7 = vector.broadcast %6 : vector<1x128xf32> to vector<256x128xf32>
    %8 = arith.addf %5, %7 : vector<256x128xf32>
    %cst_7 = arith.constant 0.000000e+00 : f32
    %9 = vector.broadcast %cst_7 : f32 to vector<256x128xf32>
    %10 = arith.maximumf %8, %9 : vector<256x128xf32>
    %11 = arith.truncf %10 : vector<256x128xf32> to vector<256x128xbf16>
    %c0_8 = arith.constant 0 : index
    %c0_9 = arith.constant 0 : index
    %12 = vector.load %arg5[%c0_8, %c0_9] : memref<256x128xbf16, #tpu.memory_space<vmem>>, vector<256x128xbf16>
    tpu.vector_store %arg5[%c0_8, %c0_9], %11 {strides = array<i32>} : memref<256x128xbf16, #tpu.memory_space<vmem>>, vector<256x128xbf16>,
    return
  }
  func.func @transform_0(%arg0: i32) -> (i32, i32) {
    %c0_i32 = arith.constant 0 : i32
    %c0_i32_0 = arith.constant 0 : i32
    return %arg0, %c0_i32 : i32, i32
  }
  func.func @transform_1(%arg0: i32) -> (i32, i32) {
    %c0_i32 = arith.constant 0 : i32
    %c0_i32_0 = arith.constant 0 : i32
    %c0_i32_1 = arith.constant 0 : i32
    return %c0_i32, %c0_i32_0 : i32, i32
  }
  func.func @transform_2(%arg0: i32) -> (i32, i32) {
    %c0_i32 = arith.constant 0 : i32
    %c0_i32_0 = arith.constant 0 : i32
    %c0_i32_1 = arith.constant 0 : i32
    return %c0_i32, %c0_i32_0 : i32, i32
  }
  func.func @transform_3(%arg0: i32) -> (i32, i32) {
    %c0_i32 = arith.constant 0 : i32
    %c0_i32_0 = arith.constant 0 : i32
    %c0_i32_1 = arith.constant 0 : i32
    return %c0_i32, %c0_i32_0 : i32, i32
  }
  func.func @transform_4(%arg0: i32) -> (i32, i32) {
    %c0_i32 = arith.constant 0 : i32
    %c0_i32_0 = arith.constant 0 : i32
    return %arg0, %c0_i32 : i32, i32
  }
}

</mosaic_0001>

<llo_original>
// kernel: basic_conv2d.1
$region0: #{basic_conv2d.1}
  #allocation0 [shape = 'u32[]', space=smem, size = 0x4, offset = 0x4, fixed_abs, tag = 'smem constant byte address 0x4 - core index']
  #allocation1 [shape = 'u32[72,128]{1,0:T(1,128)}', space=vmem, size = 0x9000, scoped, tag = 'internal scratch']
  %s0 = inlined_call_operand.vmem [shape: bf16[512,128], index: 0, kind: input, shape index: {}]
  %s1 = inlined_call_operand.vmem [shape: bf16[128,128], index: 1, kind: input, shape index: {}]
  %s2 = inlined_call_operand.vmem [shape: f32[1,128], index: 2, kind: input, shape index: {}]
  %s3 = inlined_call_operand.vmem [shape: f32[1,128], index: 3, kind: input, shape index: {}]
  %s4 = inlined_call_operand.vmem [shape: bf16[512,128], index: 4, kind: output, shape index: {}]
  %s5 = sld [smem:[#allocation0]]
  $region49: #{basic_conv2d.1} parent=0
    _
  %s7 = ssub.s32 1, %s5
  %s8 = scalar_select 0, %s7, %s5
  loop: start=0, step=1, limit=4
  $region2: #{basic_conv2d.1} parent=0 // loop_pre_header
    _
  $region3: #{basic_conv2d.1} parent=0 // loop_header
    %s10 = sphi 0, %s14
    %p11 = scmp.ge.s32.totalorder %s10, 4
    %s20 = sphi 0, %s22
    %s23 = sphi 0, %s20
    %s24 = sphi 0, %s23
    %s40 = sphi 0, %s24
    %s44 = sphi 0, %s44
    %s46 = sphi 0, %s44
    %s47 = sphi 0, %s46
    %s61 = sphi 0, %s47
    %s65 = sphi 0, %s65
    %s67 = sphi 0, %s65
    %s68 = sphi 0, %s67
    %s82 = sphi 0, %s68
    %s86 = sphi 0, %s86
    %s88 = sphi 0, %s86
    %s89 = sphi 0, %s88
    %s103 = sphi 0, %s89
    %s109 = sphi 0, %s111
    %s112 = sphi 0, %s109
    %s113 = sphi 0, %s112
    %s129 = sphi 0, %s113
  $region4: #{basic_conv2d.1} parent=0 // loop_header_branch
    %13 = sbr.rel (%p11) target = $region8
  $region5: #{basic_conv2d.1} parent=0 // loop_body
    %s15 = ssub.s32 %s10, 1
    %s16 = ssub.s32 %s10, 2
    %s17 = sadd.s32 %s10, 1
    %s18 = ssub.s32 %s10, %s17
    %p19 = scmp.eq.s32.totalorder %s18, 0
    %s21 = sadd.s32 %s20, 1
    %s22 = scalar_select %p19, %s20, %s21
    %p25 = pneg %p19
    %p26 = scmp.eq.s32.totalorder %s10, 1
    %p27 = por %p25, %p26
    %p28 = scmp.ne.s32.totalorder %s20, %s23
    %p29 = scmp.eq.s32.totalorder %s10, 0
    %p30 = por %p28, %p29
    %p31 = scmp.ne.s32.totalorder %s20, %s23
    %p32 = scmp.eq.s32.totalorder %s15, 1
    %p33 = por %p31, %p32
    %p34 = scmp.ne.s32.totalorder %s23, %s24
    %p35 = scmp.eq.s32.totalorder %s15, 0
    %p36 = por %p34, %p35
    %p37 = scmp.ne.s32.totalorder %s23, %s24
    %p38 = scmp.eq.s32.totalorder %s16, 1
    %p39 = por %p37, %p38
    %p41 = scmp.ne.s32.totalorder %s24, %s40
    %p42 = scmp.eq.s32.totalorder %s16, 0
    %p43 = por %p41, %p42
    %s45 = sadd.s32 %s44, 1
    %p48 = scmp.eq.s32.totalorder %s10, 1
    %p49 = scmp.ne.s32.totalorder %s44, %s46
    %p50 = scmp.eq.s32.totalorder %s10, 0
    %p51 = por %p49, %p50
    %p52 = scmp.ne.s32.totalorder %s44, %s46
    %p53 = scmp.eq.s32.totalorder %s15, 1
    %p54 = por %p52, %p53
    %p55 = scmp.ne.s32.totalorder %s46, %s47
    %p56 = scmp.eq.s32.totalorder %s15, 0
    %p57 = por %p55, %p56
    %p58 = scmp.ne.s32.totalorder %s46, %s47
    %p59 = scmp.eq.s32.totalorder %s16, 1
    %p60 = por %p58, %p59
    %p62 = scmp.ne.s32.totalorder %s47, %s61
    %p63 = scmp.eq.s32.totalorder %s16, 0
    %p64 = por %p62, %p63
    %s66 = sadd.s32 %s65, 1
    %p69 = scmp.eq.s32.totalorder %s10, 1
    %p70 = scmp.ne.s32.totalorder %s65, %s67
    %p71 = scmp.eq.s32.totalorder %s10, 0
    %p72 = por %p70, %p71
    %p73 = scmp.ne.s32.totalorder %s65, %s67
    %p74 = scmp.eq.s32.totalorder %s15, 1
    %p75 = por %p73, %p74
    %p76 = scmp.ne.s32.totalorder %s67, %s68
    %p77 = scmp.eq.s32.totalorder %s15, 0
    %p78 = por %p76, %p77
    %p79 = scmp.ne.s32.totalorder %s67, %s68
    %p80 = scmp.eq.s32.totalorder %s16, 1
    %p81 = por %p79, %p80
    %p83 = scmp.ne.s32.totalorder %s68, %s82
    %p84 = scmp.eq.s32.totalorder %s16, 0
    %p85 = por %p83, %p84
    %s87 = sadd.s32 %s86, 1
    %p90 = scmp.eq.s32.totalorder %s10, 1
    %p91 = scmp.ne.s32.totalorder %s86, %s88
    %p92 = scmp.eq.s32.totalorder %s10, 0
    %p93 = por %p91, %p92
    %p94 = scmp.ne.s32.totalorder %s86, %s88
    %p95 = scmp.eq.s32.totalorder %s15, 1
    %p96 = por %p94, %p95
    %p97 = scmp.ne.s32.totalorder %s88, %s89
    %p98 = scmp.eq.s32.totalorder %s15, 0
    %p99 = por %p97, %p98
    %p100 = scmp.ne.s32.totalorder %s88, %s89
    %p101 = scmp.eq.s32.totalorder %s16, 1
    %p102 = por %p100, %p101
    %p104 = scmp.ne.s32.totalorder %s89, %s103
    %p105 = scmp.eq.s32.totalorder %s16, 0
    %p106 = por %p104, %p105
    %s107 = ssub.s32 %s10, %s17
    %p108 = scmp.eq.s32.totalorder %s107, 0
    %s110 = sadd.s32 %s109, 1
    %s111 = scalar_select %p108, %s109, %s110
    %p114 = pneg %p108
    %p115 = scmp.eq.s32.totalorder %s10, 1
    %p116 = por %p114, %p115
    %p117 = scmp.ne.s32.totalorder %s109, %s112
    %p118 = scmp.eq.s32.totalorder %s10, 0
    %p119 = por %p117, %p118
    %p120 = scmp.ne.s32.totalorder %s109, %s112
    %p121 = scmp.eq.s32.totalorder %s15, 1
    %p122 = por %p120, %p121
    %p123 = scmp.ne.s32.totalorder %s112, %s113
    %p124 = scmp.eq.s32.totalorder %s15, 0
    %p125 = por %p123, %p124
    %p126 = scmp.ne.s32.totalorder %s112, %s113
    %p127 = scmp.eq.s32.totalorder %s16, 1
    %p128 = por %p126, %p127
    %p130 = scmp.ne.s32.totalorder %s113, %s129
    %p131 = scmp.eq.s32.totalorder %s16, 0
    %p132 = por %p130, %p131
    %p133 = scmp.le.s32.totalorder 1, %s10
    %p134 = scmp.lt.s32.totalorder %s10, 3
    %p135 = pnand %p133, %p134
    %p136 = pneg %p135
    // Predicated region
    $region9: #{basic_conv2d.1} parent=5 // pred_check
      _
    $region10: #{basic_conv2d.1} parent=5 // pred_check_branch
      %138 = sbr.rel (%p135) target = $region12
    $region11: #{basic_conv2d.1} parent=5 // pred_region
      %s139 = ssub.s32 %s10, 1
      // Predicated region
      $region13: #{basic_conv2d.1} parent=11 // pred_check
        %p140 = pneg %p57
      $region14: #{basic_conv2d.1} parent=11 // pred_check_branch
        %142 = sbr.rel (%p140) target = $region16
      $region15: #{basic_conv2d.1} parent=11 // pred_region
        _
      $region16: #{basic_conv2d.1} parent=11 // pred_fallthru
        _
      // Predicated region
      $region17: #{basic_conv2d.1} parent=11 // pred_check
        %p143 = pneg %p78
      $region18: #{basic_conv2d.1} parent=11 // pred_check_branch
        %145 = sbr.rel (%p143) target = $region20
      $region19: #{basic_conv2d.1} parent=11 // pred_region
        _
      $region20: #{basic_conv2d.1} parent=11 // pred_fallthru
        _
      // Predicated region
      $region21: #{basic_conv2d.1} parent=11 // pred_check
        %p146 = pneg %p99
      $region22: #{basic_conv2d.1} parent=11 // pred_check_branch
        %148 = sbr.rel (%p146) target = $region24
      $region23: #{basic_conv2d.1} parent=11 // pred_region
        _
      $region24: #{basic_conv2d.1} parent=11 // pred_fallthru
        _
    $region12: #{basic_conv2d.1} parent=5 // pred_fallthru
      _
    %p149 = scmp.lt.s32.totalorder %s10, 2
    // Predicated region
    $region25: #{basic_conv2d.1} parent=5 // pred_check
      %p150 = pneg %p149
    $region26: #{basic_conv2d.1} parent=5 // pred_check_branch
      %152 = sbr.rel (%p150) target = $region28
    $region27: #{basic_conv2d.1} parent=5 // pred_region
      // Predicated region
      $region29: #{basic_conv2d.1} parent=27 // pred_check
        %p153 = pneg %p30
      $region30: #{basic_conv2d.1} parent=27 // pred_check_branch
        %155 = sbr.rel (%p153) target = $region32
      $region31: #{basic_conv2d.1} parent=27 // pred_region
        %s156 = smul.u32 32, %s10
        %p157 = scmp.lt.s32.totalorder %s156, 63
        %s158 = scalar_select %p157, %s156, 63
        %s159 = smul.addr %s158, 4
        %s160 = scalar_lea.vmem %s0, %s159
        %s161 = smul.u32 32, %s10
      $region32: #{basic_conv2d.1} parent=27 // pred_fallthru
        _
    $region28: #{basic_conv2d.1} parent=5 // pred_fallthru
      _
    %p162 = scmp.le.s32.totalorder 1, %s10
    %p163 = scmp.lt.s32.totalorder %s10, 3
    %p164 = pnand %p162, %p163
    %p165 = pneg %p164
    // Predicated region
    $region33: #{basic_conv2d.1} parent=5 // pred_check
      _
    $region34: #{basic_conv2d.1} parent=5 // pred_check_branch
      %167 = sbr.rel (%p164) target = $region36
    $region35: #{basic_conv2d.1} parent=5 // pred_region
      %s168 = ssub.s32 %s10, 1
      %s169 = smul.u32 32, %s15
      %p170 = scmp.lt.s32.totalorder %s169, 63
      %s171 = scalar_select %p170, %s169, 63
      %s172 = smul.addr %s171, 4
      %s173 = scalar_lea.vmem %s0, %s172
      %p174 = pneg %p36
      %p175 = pneg %p33
      %p176 = pneg %p57
      %p177 = pneg %p54
      %p178 = pneg %p78
      %p179 = pneg %p75
      %p180 = pneg %p99
      %p181 = pneg %p96
      %p182 = pneg %p125
      %p183 = pneg %p122
      %s184 = smul.u32 32, %s15
      %p185 = scmp.lt.s32.totalorder %s184, 63
      %s186 = scalar_select %p185, %s184, 63
      %s187 = smul.addr %s186, 4
      %s188 = scalar_lea.vmem %s4, %s187
      %s189 = smul.u32 32, %s15
      %p190 = scmp.lt.s32.totalorder %s189, 63
      %s191 = scalar_select %p190, %s189, 63
      %s192 = smul.addr %s191, 4
      %s193 = scalar_lea.vmem %s0, %s192
      %s194 = smul.u32 32, %s15
      %s195 = smul.u32 32, %s15
      %p196 = scmp.lt.s32.totalorder %s195, 63
      %s197 = scalar_select %p196, %s195, 63
      %s198 = smul.addr %s197, 4
      %s199 = scalar_lea.vmem %s4, %s198
      %s200 = smul.u32 32, %s15
      %v201 = vld [vmem:[%s193] sm:$0xf]
      %v202 = vld [vmem:[%s193 + $0x4] sm:$0xf]
      %v203 = vld [vmem:[%s193 + $0x8] sm:$0xf]
      %v204 = vld [vmem:[%s193 + $0xc] sm:$0xf]
      %v205 = vld [vmem:[%s193 + $0x10] sm:$0xf]
      %v206 = vld [vmem:[%s193 + $0x14] sm:$0xf]
      %v207 = vld [vmem:[%s193 + $0x18] sm:$0xf]
      %v208 = vld [vmem:[%s193 + $0x1c] sm:$0xf]
      %v209 = vld [vmem:[%s193 + $0x20] sm:$0xf]
      %v210 = vld [vmem:[%s193 + $0x24] sm:$0xf]
      %v211 = vld [vmem:[%s193 + $0x28] sm:$0xf]
      %v212 = vld [vmem:[%s193 + $0x2c] sm:$0xf]
      %v213 = vld [vmem:[%s193 + $0x30] sm:$0xf]
      %v214 = vld [vmem:[%s193 + $0x34] sm:$0xf]
      %v215 = vld [vmem:[%s193 + $0x38] sm:$0xf]
      %v216 = vld [vmem:[%s193 + $0x3c] sm:$0xf]
      %v217 = vld [vmem:[%s193 + $0x40] sm:$0xf]
      %v218 = vld [vmem:[%s193 + $0x44] sm:$0xf]
      %v219 = vld [vmem:[%s193 + $0x48] sm:$0xf]
      %v220 = vld [vmem:[%s193 + $0x4c] sm:$0xf]
      %v221 = vld [vmem:[%s193 + $0x50] sm:$0xf]
      %v222 = vld [vmem:[%s193 + $0x54] sm:$0xf]
      %v223 = vld [vmem:[%s193 + $0x58] sm:$0xf]
      %v224 = vld [vmem:[%s193 + $0x5c] sm:$0xf]
      %v225 = vld [vmem:[%s193 + $0x60] sm:$0xf]
      %v226 = vld [vmem:[%s193 + $0x64] sm:$0xf]
      %v227 = vld [vmem:[%s193 + $0x68] sm:$0xf]
      %v228 = vld [vmem:[%s193 + $0x6c] sm:$0xf]
      %v229 = vld [vmem:[%s193 + $0x70] sm:$0xf]
      %v230 = vld [vmem:[%s193 + $0x74] sm:$0xf]
      %v231 = vld [vmem:[%s193 + $0x78] sm:$0xf]
      %v232 = vld [vmem:[%s193 + $0x7c] sm:$0xf]
      %v233 = vld [vmem:[%s1] sm:$0xf]
      %v234 = vld [vmem:[%s1 + $0x4] sm:$0xf]
      %v235 = vld [vmem:[%s1 + $0x8] sm:$0xf]
      %v236 = vld [vmem:[%s1 + $0xc] sm:$0xf]
      %v237 = vld [vmem:[%s1 + $0x10] sm:$0xf]
      %v238 = vld [vmem:[%s1 + $0x14] sm:$0xf]
      %v239 = vld [vmem:[%s1 + $0x18] sm:$0xf]
      %v240 = vld [vmem:[%s1 + $0x1c] sm:$0xf]
      %v241 = vld [vmem:[%s1 + $0x20] sm:$0xf]
      %v242 = vld [vmem:[%s1 + $0x24] sm:$0xf]
      %v243 = vld [vmem:[%s1 + $0x28] sm:$0xf]
      %v244 = vld [vmem:[%s1 + $0x2c] sm:$0xf]
      %v245 = vld [vmem:[%s1 + $0x30] sm:$0xf]
      %v246 = vld [vmem:[%s1 + $0x34] sm:$0xf]
      %v247 = vld [vmem:[%s1 + $0x38] sm:$0xf]
      %v248 = vld [vmem:[%s1 + $0x3c] sm:$0xf]
      %v281 = vunpack.c.l.b16 %v201
      %v282 = vunpack.c.l.b16 %v202
      %v283 = vunpack.c.l.b16 %v203
      %v284 = vunpack.c.l.b16 %v204
      %v285 = vunpack.c.l.b16 %v205
      %v286 = vunpack.c.l.b16 %v206
      %v287 = vunpack.c.l.b16 %v207
      %v288 = vunpack.c.l.b16 %v208
      %v289 = vunpack.c.l.b16 %v209
      %v290 = vunpack.c.l.b16 %v210
      %v291 = vunpack.c.l.b16 %v211
      %v292 = vunpack.c.l.b16 %v212
      %v293 = vunpack.c.l.b16 %v213
      %v294 = vunpack.c.l.b16 %v214
      %v295 = vunpack.c.l.b16 %v215
      %v296 = vunpack.c.l.b16 %v216
      %v297 = vunpack.c.l.b16 %v217
      %v298 = vunpack.c.l.b16 %v218
      %v299 = vunpack.c.l.b16 %v219
      %v300 = vunpack.c.l.b16 %v220
      %v301 = vunpack.c.l.b16 %v221
      %v302 = vunpack.c.l.b16 %v222
      %v303 = vunpack.c.l.b16 %v223
      %v304 = vunpack.c.l.b16 %v224
      %v305 = vunpack.c.l.b16 %v225
      %v306 = vunpack.c.l.b16 %v226
      %v307 = vunpack.c.l.b16 %v227
      %v308 = vunpack.c.l.b16 %v228
      %v309 = vunpack.c.l.b16 %v229
      %v310 = vunpack.c.l.b16 %v230
      %v311 = vunpack.c.l.b16 %v231
      %v312 = vunpack.c.l.b16 %v232
      %v313 = vpack.c.b16 %v282, %v281
      %v314 = vpack.c.b16 %v284, %v283
      %v315 = vpack.c.b16 %v286, %v285
      %v316 = vpack.c.b16 %v288, %v287
      %v317 = vpack.c.b16 %v290, %v289
      %v318 = vpack.c.b16 %v292, %v291
      %v319 = vpack.c.b16 %v294, %v293
      %v320 = vpack.c.b16 %v296, %v295
      %v321 = vpack.c.b16 %v298, %v297
      %v322 = vpack.c.b16 %v300, %v299
      %v323 = vpack.c.b16 %v302, %v301
      %v324 = vpack.c.b16 %v304, %v303
      %v325 = vpack.c.b16 %v306, %v305
      %v326 = vpack.c.b16 %v308, %v307
      %v327 = vpack.c.b16 %v310, %v309
      %v328 = vpack.c.b16 %v312, %v311
      %v361 = vunpack.c.l.b16 %v233
      %v362 = vunpack.c.l.b16 %v234
      %v363 = vunpack.c.l.b16 %v235
      %v364 = vunpack.c.l.b16 %v236
      %v365 = vunpack.c.l.b16 %v237
      %v366 = vunpack.c.l.b16 %v238
      %v367 = vunpack.c.l.b16 %v239
      %v368 = vunpack.c.l.b16 %v240
      %v369 = vunpack.c.l.b16 %v241
      %v370 = vunpack.c.l.b16 %v242
      %v371 = vunpack.c.l.b16 %v243
      %v372 = vunpack.c.l.b16 %v244
      %v373 = vunpack.c.l.b16 %v245
      %v374 = vunpack.c.l.b16 %v246
      %v375 = vunpack.c.l.b16 %v247
      %v376 = vunpack.c.l.b16 %v248
      %v377 = vpack.c.b16 %v362, %v361
      %v378 = vpack.c.b16 %v364, %v363
      %v379 = vpack.c.b16 %v366, %v365
      %v380 = vpack.c.b16 %v368, %v367
      %v381 = vpack.c.b16 %v370, %v369
      %v382 = vpack.c.b16 %v372, %v371
      %v383 = vpack.c.b16 %v374, %v373
      %v384 = vpack.c.b16 %v376, %v375
      %393 = vmatpush.bf16.msra.mxu0 %v384
      %394 = vmatpush.bf16.msra.mxu0 %v383
      %395 = vmatpush.bf16.msra.mxu0 %v382
      %396 = vmatpush.bf16.msra.mxu0 %v381
      %397 = vmatpush.bf16.msra.mxu0 %v380
      %398 = vmatpush.bf16.msra.mxu0 %v379
      %399 = vmatpush.bf16.msra.mxu0 %v378
      %400 = vmatpush.bf16.msra.mxu0 %v377
      %401 = vmatmul.bf16.gmra.mxu0 %v313
      %v402 = vpop.f32.mrf.mxu0
      %v403 = vadd.f32 0.0, %v402
      %v404 = vpop.f32.mrf.mxu0
      %v405 = vadd.f32 0.0, %v404
      %406 = vmatmul.bf16.gmra.mxu0 %v314
      %v407 = vpop.f32.mrf.mxu0
      %v408 = vadd.f32 0.0, %v407
      %v409 = vpop.f32.mrf.mxu0
      %v410 = vadd.f32 0.0, %v409
      %411 = vmatmul.bf16.gmra.mxu0 %v315
      %v412 = vpop.f32.mrf.mxu0
      %v413 = vadd.f32 0.0, %v412
      %v414 = vpop.f32.mrf.mxu0
      %v415 = vadd.f32 0.0, %v414
      %416 = vmatmul.bf16.gmra.mxu0 %v316
      %v417 = vpop.f32.mrf.mxu0
      %v418 = vadd.f32 0.0, %v417
      %v419 = vpop.f32.mrf.mxu0
      %v420 = vadd.f32 0.0, %v419
      %421 = vmatmul.bf16.gmra.mxu0 %v317
      %v422 = vpop.f32.mrf.mxu0
      %v423 = vadd.f32 0.0, %v422
      %v424 = vpop.f32.mrf.mxu0
      %v425 = vadd.f32 0.0, %v424
      %426 = vmatmul.bf16.gmra.mxu0 %v318
      %v427 = vpop.f32.mrf.mxu0
      %v428 = vadd.f32 0.0, %v427
      %v429 = vpop.f32.mrf.mxu0
      %v430 = vadd.f32 0.0, %v429
      %431 = vmatmul.bf16.gmra.mxu0 %v319
      %v432 = vpop.f32.mrf.mxu0
      %v433 = vadd.f32 0.0, %v432
      %v434 = vpop.f32.mrf.mxu0
      %v435 = vadd.f32 0.0, %v434
      %436 = vmatmul.bf16.gmra.mxu0 %v320
      %v437 = vpop.f32.mrf.mxu0
      %v438 = vadd.f32 0.0, %v437
      %v439 = vpop.f32.mrf.mxu0
      %v440 = vadd.f32 0.0, %v439
      %441 = vmatmul.bf16.gmra.mxu0 %v321
      %v442 = vpop.f32.mrf.mxu0
      %v443 = vadd.f32 0.0, %v442
      %v444 = vpop.f32.mrf.mxu0
      %v445 = vadd.f32 0.0, %v444
      %446 = vmatmul.bf16.gmra.mxu0 %v322
      %v447 = vpop.f32.mrf.mxu0
      %v448 = vadd.f32 0.0, %v447
      %v449 = vpop.f32.mrf.mxu0
      %v450 = vadd.f32 0.0, %v449
      %451 = vmatmul.bf16.gmra.mxu0 %v323
      %v452 = vpop.f32.mrf.mxu0
      %v453 = vadd.f32 0.0, %v452
      %v454 = vpop.f32.mrf.mxu0
      %v455 = vadd.f32 0.0, %v454
      %456 = vmatmul.bf16.gmra.mxu0 %v324
      %v457 = vpop.f32.mrf.mxu0
      %v458 = vadd.f32 0.0, %v457
      %v459 = vpop.f32.mrf.mxu0
      %v460 = vadd.f32 0.0, %v459
      %461 = vmatmul.bf16.gmra.mxu0 %v325
      %v462 = vpop.f32.mrf.mxu0
      %v463 = vadd.f32 0.0, %v462
      %v464 = vpop.f32.mrf.mxu0
      %v465 = vadd.f32 0.0, %v464
      %466 = vmatmul.bf16.gmra.mxu0 %v326
      %v467 = vpop.f32.mrf.mxu0
      %v468 = vadd.f32 0.0, %v467
      %v469 = vpop.f32.mrf.mxu0
      %v470 = vadd.f32 0.0, %v469
      %471 = vmatmul.bf16.gmra.mxu0 %v327
      %v472 = vpop.f32.mrf.mxu0
      %v473 = vadd.f32 0.0, %v472
      %v474 = vpop.f32.mrf.mxu0
      %v475 = vadd.f32 0.0, %v474
      %476 = vmatmul.bf16.gmra.mxu0 %v328
      %v477 = vpop.f32.mrf.mxu0
      %v478 = vadd.f32 0.0, %v477
      %v479 = vpop.f32.mrf.mxu0
      %v480 = vadd.f32 0.0, %v479
      %481 = vdwg.mxu0
      %v482 = vld [vmem:[%s2] sm:$0x1]
      %v484 = vperm.slane %v482, 0
      %v486 = vmul.f32 %v403, %v484
      %v487 = vmul.f32 %v405, %v484
      %v488 = vmul.f32 %v408, %v484
      %v489 = vmul.f32 %v410, %v484
      %v490 = vmul.f32 %v413, %v484
      %v491 = vmul.f32 %v415, %v484
      %v492 = vmul.f32 %v418, %v484
      %v493 = vmul.f32 %v420, %v484
      %v494 = vmul.f32 %v423, %v484
      %v495 = vmul.f32 %v425, %v484
      %v496 = vmul.f32 %v428, %v484
      %v497 = vmul.f32 %v430, %v484
      %v498 = vmul.f32 %v433, %v484
      %v499 = vmul.f32 %v435, %v484
      %v500 = vmul.f32 %v438, %v484
      %v501 = vmul.f32 %v440, %v484
      %v502 = vmul.f32 %v443, %v484
      %v503 = vmul.f32 %v445, %v484
      %v504 = vmul.f32 %v448, %v484
      %v505 = vmul.f32 %v450, %v484
      %v506 = vmul.f32 %v453, %v484
      %v507 = vmul.f32 %v455, %v484
      %v508 = vmul.f32 %v458, %v484
      %v509 = vmul.f32 %v460, %v484
      %v510 = vmul.f32 %v463, %v484
      %v511 = vmul.f32 %v465, %v484
      %v512 = vmul.f32 %v468, %v484
      %v513 = vmul.f32 %v470, %v484
      %v514 = vmul.f32 %v473, %v484
      %v515 = vmul.f32 %v475, %v484
      %v516 = vmul.f32 %v478, %v484
      %v517 = vmul.f32 %v480, %v484
      %v518 = vld [vmem:[%s3] sm:$0x1]
      %v520 = vperm.slane %v518, 0
      %v522 = vadd.f32 %v486, %v520
      %v523 = vadd.f32 %v487, %v520
      %v524 = vadd.f32 %v488, %v520
      %v525 = vadd.f32 %v489, %v520
      %v526 = vadd.f32 %v490, %v520
      %v527 = vadd.f32 %v491, %v520
      %v528 = vadd.f32 %v492, %v520
      %v529 = vadd.f32 %v493, %v520
      %v530 = vadd.f32 %v494, %v520
      %v531 = vadd.f32 %v495, %v520
      %v532 = vadd.f32 %v496, %v520
      %v533 = vadd.f32 %v497, %v520
      %v534 = vadd.f32 %v498, %v520
      %v535 = vadd.f32 %v499, %v520
      %v536 = vadd.f32 %v500, %v520
      %v537 = vadd.f32 %v501, %v520
      %v538 = vadd.f32 %v502, %v520
      %v539 = vadd.f32 %v503, %v520
      %v540 = vadd.f32 %v504, %v520
      %v541 = vadd.f32 %v505, %v520
      %v542 = vadd.f32 %v506, %v520
      %v543 = vadd.f32 %v507, %v520
      %v544 = vadd.f32 %v508, %v520
      %v545 = vadd.f32 %v509, %v520
      %v546 = vadd.f32 %v510, %v520
      %v547 = vadd.f32 %v511, %v520
      %v548 = vadd.f32 %v512, %v520
      %v549 = vadd.f32 %v513, %v520
      %v550 = vadd.f32 %v514, %v520
      %v551 = vadd.f32 %v515, %v520
      %v552 = vadd.f32 %v516, %v520
      %v553 = vadd.f32 %v517, %v520
      %v554 = vmax.f32 %v522, 0.0
      %v555 = vmax.f32 %v523, 0.0
      %v556 = vmax.f32 %v524, 0.0
      %v557 = vmax.f32 %v525, 0.0
      %v558 = vmax.f32 %v526, 0.0
      %v559 = vmax.f32 %v527, 0.0
      %v560 = vmax.f32 %v528, 0.0
      %v561 = vmax.f32 %v529, 0.0
      %v562 = vmax.f32 %v530, 0.0
      %v563 = vmax.f32 %v531, 0.0
      %v564 = vmax.f32 %v532, 0.0
      %v565 = vmax.f32 %v533, 0.0
      %v566 = vmax.f32 %v534, 0.0
      %v567 = vmax.f32 %v535, 0.0
      %v568 = vmax.f32 %v536, 0.0
      %v569 = vmax.f32 %v537, 0.0
      %v570 = vmax.f32 %v538, 0.0
      %v571 = vmax.f32 %v539, 0.0
      %v572 = vmax.f32 %v540, 0.0
      %v573 = vmax.f32 %v541, 0.0
      %v574 = vmax.f32 %v542, 0.0
      %v575 = vmax.f32 %v543, 0.0
      %v576 = vmax.f32 %v544, 0.0
      %v577 = vmax.f32 %v545, 0.0
      %v578 = vmax.f32 %v546, 0.0
      %v579 = vmax.f32 %v547, 0.0
      %v580 = vmax.f32 %v548, 0.0
      %v581 = vmax.f32 %v549, 0.0
      %v582 = vmax.f32 %v550, 0.0
      %v583 = vmax.f32 %v551, 0.0
      %v584 = vmax.f32 %v552, 0.0
      %v585 = vmax.f32 %v553, 0.0
      %v586 = vpack.c.bf16 %v554, %v554
      %v587 = vpack.c.bf16 %v555, %v555
      %v588 = vpack.c.bf16 %v556, %v556
      %v589 = vpack.c.bf16 %v557, %v557
      %v590 = vpack.c.bf16 %v558, %v558
      %v591 = vpack.c.bf16 %v559, %v559
      %v592 = vpack.c.bf16 %v560, %v560
      %v593 = vpack.c.bf16 %v561, %v561
      %v594 = vpack.c.bf16 %v562, %v562
      %v595 = vpack.c.bf16 %v563, %v563
      %v596 = vpack.c.bf16 %v564, %v564
      %v597 = vpack.c.bf16 %v565, %v565
      %v598 = vpack.c.bf16 %v566, %v566
      %v599 = vpack.c.bf16 %v567, %v567
      %v600 = vpack.c.bf16 %v568, %v568
      %v601 = vpack.c.bf16 %v569, %v569
      %v602 = vpack.c.bf16 %v570, %v570
      %v603 = vpack.c.bf16 %v571, %v571
      %v604 = vpack.c.bf16 %v572, %v572
      %v605 = vpack.c.bf16 %v573, %v573
      %v606 = vpack.c.bf16 %v574, %v574
      %v607 = vpack.c.bf16 %v575, %v575
      %v608 = vpack.c.bf16 %v576, %v576
      %v609 = vpack.c.bf16 %v577, %v577
      %v610 = vpack.c.bf16 %v578, %v578
      %v611 = vpack.c.bf16 %v579, %v579
      %v612 = vpack.c.bf16 %v580, %v580
      %v613 = vpack.c.bf16 %v581, %v581
      %v614 = vpack.c.bf16 %v582, %v582
      %v615 = vpack.c.bf16 %v583, %v583
      %v616 = vpack.c.bf16 %v584, %v584
      %v617 = vpack.c.bf16 %v585, %v585
      %618 = vst [vmem:[%s199] sm:$0xf] %v586
      %619 = vst [vmem:[%s199 + $0x4] sm:$0xf] %v587
      %620 = vst [vmem:[%s199 + $0x8] sm:$0xf] %v588
      %621 = vst [vmem:[%s199 + $0xc] sm:$0xf] %v589
      %622 = vst [vmem:[%s199 + $0x10] sm:$0xf] %v590
      %623 = vst [vmem:[%s199 + $0x14] sm:$0xf] %v591
      %624 = vst [vmem:[%s199 + $0x18] sm:$0xf] %v592
      %625 = vst [vmem:[%s199 + $0x1c] sm:$0xf] %v593
      %626 = vst [vmem:[%s199 + $0x20] sm:$0xf] %v594
      %627 = vst [vmem:[%s199 + $0x24] sm:$0xf] %v595
      %628 = vst [vmem:[%s199 + $0x28] sm:$0xf] %v596
      %629 = vst [vmem:[%s199 + $0x2c] sm:$0xf] %v597
      %630 = vst [vmem:[%s199 + $0x30] sm:$0xf] %v598
      %631 = vst [vmem:[%s199 + $0x34] sm:$0xf] %v599
      %632 = vst [vmem:[%s199 + $0x38] sm:$0xf] %v600
      %633 = vst [vmem:[%s199 + $0x3c] sm:$0xf] %v601
      %634 = vst [vmem:[%s199 + $0x40] sm:$0xf] %v602
      %635 = vst [vmem:[%s199 + $0x44] sm:$0xf] %v603
      %636 = vst [vmem:[%s199 + $0x48] sm:$0xf] %v604
      %637 = vst [vmem:[%s199 + $0x4c] sm:$0xf] %v605
      %638 = vst [vmem:[%s199 + $0x50] sm:$0xf] %v606
      %639 = vst [vmem:[%s199 + $0x54] sm:$0xf] %v607
      %640 = vst [vmem:[%s199 + $0x58] sm:$0xf] %v608
      %641 = vst [vmem:[%s199 + $0x5c] sm:$0xf] %v609
      %642 = vst [vmem:[%s199 + $0x60] sm:$0xf] %v610
      %643 = vst [vmem:[%s199 + $0x64] sm:$0xf] %v611
      %644 = vst [vmem:[%s199 + $0x68] sm:$0xf] %v612
      %645 = vst [vmem:[%s199 + $0x6c] sm:$0xf] %v613
      %646 = vst [vmem:[%s199 + $0x70] sm:$0xf] %v614
      %647 = vst [vmem:[%s199 + $0x74] sm:$0xf] %v615
      %648 = vst [vmem:[%s199 + $0x78] sm:$0xf] %v616
      %649 = vst [vmem:[%s199 + $0x7c] sm:$0xf] %v617
      %s650 = smul.u32 32, %s15
      %p651 = scmp.lt.s32.totalorder %s650, 63
      %s652 = scalar_select %p651, %s650, 63
      %s653 = smul.addr %s652, 4
      %s654 = scalar_lea.vmem %s4, %s653
      // Predicated region
      $region37: #{basic_conv2d.1} parent=35 // pred_check
        %p655 = pneg %p122
      $region38: #{basic_conv2d.1} parent=35 // pred_check_branch
        %657 = sbr.rel (%p655) target = $region40
      $region39: #{basic_conv2d.1} parent=35 // pred_region
        %s658 = smul.u32 32, %s15
      $region40: #{basic_conv2d.1} parent=35 // pred_fallthru
        _
    $region36: #{basic_conv2d.1} parent=5 // pred_fallthru
      _
    %p659 = scmp.le.s32.totalorder 2, %s10
    // Predicated region
    $region41: #{basic_conv2d.1} parent=5 // pred_check
      %p660 = pneg %p659
    $region42: #{basic_conv2d.1} parent=5 // pred_check_branch
      %662 = sbr.rel (%p660) target = $region44
    $region43: #{basic_conv2d.1} parent=5 // pred_region
      %s663 = ssub.s32 %s10, 2
      // Predicated region
      $region45: #{basic_conv2d.1} parent=43 // pred_check
        %p664 = pneg %p128
      $region46: #{basic_conv2d.1} parent=43 // pred_check_branch
        %666 = sbr.rel (%p664) target = $region48
      $region47: #{basic_conv2d.1} parent=43 // pred_region
        %s667 = smul.u32 32, %s16
        %p668 = scmp.lt.s32.totalorder %s667, 63
        %s669 = scalar_select %p668, %s667, 63
        %s670 = smul.addr %s669, 4
        %s671 = scalar_lea.vmem %s4, %s670
      $region48: #{basic_conv2d.1} parent=43 // pred_fallthru
        _
    $region44: #{basic_conv2d.1} parent=5 // pred_fallthru
      _
  $region6: #{basic_conv2d.1} parent=0 // loop_footer
    %s14 = sadd.s32 1, %s10
  $region7: #{basic_conv2d.1} parent=0 // loop_footer_branch
    %9 = sbr.rel target = $region3
  $region8: #{basic_conv2d.1} parent=0 // loop_exit
    _

</llo_original>
